<compile_context>
chip_gen: v5e
topology: v5e:2x2
jax: 0.10.0
libtpu: 0.0.40
codegen_flags: <defaults>
</compile_context>

<pallas_src>
import functools

import jax
import jax.numpy as jnp
from jax.experimental import pallas as pl
from jax.experimental.pallas import tpu as pltpu


def gcn_kernel(text_ref, adj_ref, w_ref, bias_ref, out_ref, *, bt, n):
    """One grid step processes `bt` graphs.

    text_ref: (bt*n, Fin)   adj_ref: (bt, n, n)
    w_ref:    (Fin, Fout)   bias_ref: (1, Fout)
    out_ref:  (bt, n, Fout)
    """
    fout = out_ref.shape[-1]

    # One MXU matmul for all bt graphs' text @ W (fills the MXU rows), f32 acc.
    hidden = jnp.dot(
        text_ref[...], w_ref[...], preferred_element_type=jnp.float32
    )  # (bt*n, Fout) f32
    hidden = hidden.reshape(bt, n, fout)  # layout-preserving when n % 8 == 0

    # Batched normalization: (A @ H) / d == (A / d) @ H with d = rowsum(A) + 1.
    # Row-sum is forced to f32 regardless of adj's incoming dtype.
    adj = adj_ref[...].astype(jnp.float32)                 # (bt, n, n)
    denom = jnp.sum(adj, axis=2, keepdims=True) + 1.0      # (bt, n, 1), f32
    inv = pl.reciprocal(denom, approx=True)                # EUP slot, ~free
    adj_n = adj * inv                                      # (bt, n, n)

    # One batched contraction for all bt graphs (lowers to contiguous vmatmuls).
    agg = jnp.einsum(
        "bij,bjf->bif", adj_n, hidden, preferred_element_type=jnp.float32
    )  # (bt, n, Fout)

    bias = bias_ref[...].reshape(1, 1, fout)
    out_ref[...] = (agg + bias).astype(out_ref.dtype)


def _vmem_tile_bytes(shape, dtype):
    """VMEM footprint of an array including (sublane, 128-lane) tile padding."""
    itemsize = jnp.dtype(dtype).itemsize
    sublane = max(8, 32 // itemsize)  # 8 for f32, 16 for bf16, 32 for int8
    shape = (1,) * max(0, 2 - len(shape)) + tuple(shape)
    lead = 1
    for d in shape[:-2]:
        lead *= int(d)
    rows = -(-int(shape[-2]) // sublane) * sublane
    cols = -(-int(shape[-1]) // 128) * 128
    return lead * rows * cols * itemsize


def _vmem_capacity_bytes():
    try:
        return int(pltpu.get_tpu_info().vmem_capacity_bytes)
    except Exception:
        return 64 * 1024 * 1024  # conservative default (v7x per-core VMEM)


def _block_set_bytes(bt, N, Fin, Fout, text_dtype, adj_dtype):
    """Layout-aware VMEM estimate for one grid step.

    The Pallas pipeline double-buffers every input/output block (weight/bias
    included); in-kernel f32 temporaries (hidden, adj_f32/adj_norm, agg) are
    added on top.
    """
    text_b = _vmem_tile_bytes((bt * N, Fin), text_dtype)
    adj_b = _vmem_tile_bytes((bt, N, N), adj_dtype)   # ~8x raw bytes for small N
    out_b = _vmem_tile_bytes((bt, N, Fout), jnp.float32)
    w_b = _vmem_tile_bytes((Fin, Fout), jnp.float32)
    b_b = _vmem_tile_bytes((1, Fout), jnp.float32)
    temps = (
        _vmem_tile_bytes((bt * N, Fout), jnp.float32)     # hidden
        + 2 * _vmem_tile_bytes((bt, N, N), jnp.float32)   # adj_f32, adj_norm
        + _vmem_tile_bytes((bt, N, Fout), jnp.float32)    # agg
    )
    # TODO(synk): single-buffer the constant weight/bias blocks via
    # pipeline_mode=pl.Buffered(1); they are conservatively counted 2x here.
    return 2 * (text_b + adj_b + out_b + w_b + b_b) + temps


def _choose_batch_tile(B, N, Fin, Fout, text_dtype, adj_dtype,
                       budget_bytes, max_rows=1024):
    """Largest bt whose double-buffered block set fits the VMEM budget.

    Keeps at least 2 grid steps when B >= 2 (megacore split on v7x; the extra
    ~0.35us step is negligible on 1-TC chips) and keeps bt*N % 8 == 0 so the
    flattened (bt*N, Fin) text block satisfies the (8, 128) tiling rule.
    """
    max_bt = B if B < 2 else pl.cdiv(B, 2)
    best = 1
    for bt in range(1, max_bt + 1):
        if bt * N > max_rows:
            break
        if (bt * N) % 8 != 0 and bt < B:
            continue
        if _block_set_bytes(bt, N, Fin, Fout, text_dtype, adj_dtype) > budget_bytes:
            break
        best = bt
    return best


def gcn_forward(text, adj, weight, bias=None):
    B, N, Fin = text.shape
    Fout = weight.shape[1]
    assert adj.shape == (B, N, N)

    vmem_cap = _vmem_capacity_bytes()
    budget = min(vmem_cap // 4, 20 * 1024 * 1024)       # block-set budget
    vmem_limit = min(vmem_cap // 2, 64 * 1024 * 1024)   # explicit scoped limit

    bt = _choose_batch_tile(B, N, Fin, Fout, text.dtype, adj.dtype, budget)
    steps = pl.cdiv(B, bt)
    Bp = steps * bt

    # Zero-pad the batch so any B works with the chosen bt (padded graphs have
    # denom == 1 and are sliced off below).
    if Bp != B:
        text = jnp.pad(text, ((0, Bp - B), (0, 0), (0, 0)))
        adj = jnp.pad(adj, ((0, Bp - B), (0, 0), (0, 0)))

    # Flatten text to 2D so text @ W is a single row-dense MXU matmul per step.
    # No forced f32 upcast: stream at the incoming dtype, accumulate in f32.
    text2d = text.reshape(Bp * N, Fin)

    w = weight.astype(jnp.float32)  # module parameter is f32
    if bias is None:
        bias2d = jnp.zeros((1, Fout), jnp.float32)
    else:
        bias2d = bias.astype(jnp.float32).reshape(1, Fout)

    kernel = functools.partial(gcn_kernel, bt=bt, n=N)

    flops = 2 * Bp * N * Fin * Fout + 2 * Bp * N * N * Fout + 2 * Bp * N * N
    bytes_accessed = (
        text2d.size * text2d.dtype.itemsize
        + adj.size * adj.dtype.itemsize
        + w.size * 4
        + bias2d.size * 4
        + Bp * N * Fout * 4
    )
    cost = pl.CostEstimate(
        flops=flops, transcendentals=Bp * N, bytes_accessed=bytes_accessed
    )

    out = pl.pallas_call(
        kernel,
        out_shape=jax.ShapeDtypeStruct((Bp, N, Fout), jnp.float32),
        grid_spec=pltpu.PrefetchScalarGridSpec(
            num_scalar_prefetch=0,
            grid=(steps,),
            in_specs=[
                pl.BlockSpec((bt * N, Fin), lambda i: (i, 0)),
                pl.BlockSpec((bt, N, N), lambda i: (i, 0, 0)),
                pl.BlockSpec((Fin, Fout), lambda i: (0, 0)),
                pl.BlockSpec((1, Fout), lambda i: (0, 0)),
            ],
            out_specs=pl.BlockSpec((bt, N, Fout), lambda i: (i, 0, 0)),
        ),
        compiler_params=pltpu.CompilerParams(
            dimension_semantics=("parallel",),
            vmem_limit_bytes=vmem_limit,
        ),
        cost_estimate=cost,
    )(text2d, adj, w, bias2d)

    return out[:B] if Bp != B else out


def gcn_reference(text, adj, weight, bias):
    hidden = jnp.matmul(text.astype(jnp.float32), weight)
    denom = jnp.sum(adj, axis=2, keepdims=True) + 1.0
    out = jnp.matmul(adj, hidden) / denom
    if bias is not None:
        out = out + bias
    return out


if __name__ == "__main__":
    # Small deterministic example shapes.
    B, N = 2, 16          # batch, num_nodes
    Fin, Fout = 32, 32    # in_features, out_features

    key = jax.random.PRNGKey(0)
    k_text, k_adj, k_w, k_b = jax.random.split(key, 4)

    text = jax.random.normal(k_text, (B, N, Fin), dtype=jnp.float32)
    # Simple dense "adjacency"-like matrix (non-negative, plus self-loops).
    adj = (jax.random.uniform(k_adj, (B, N, N), dtype=jnp.float32) > 0.6).astype(
        jnp.float32
    ) + jnp.eye(N, dtype=jnp.float32)[None, :, :]

    # Deterministic parameter init (module __init__ only declares shapes).
    weight = jax.random.normal(k_w, (Fin, Fout), dtype=jnp.float32) * 0.1
    bias = jax.random.normal(k_b, (Fout,), dtype=jnp.float32) * 0.1

    out = gcn_forward(text, adj, weight, bias)
    out = jax.block_until_ready(out)

    ref = gcn_reference(text, adj, weight, bias)
    assert out.shape == (B, N, Fout)
    # Tolerance covers the EUP approximate reciprocal (~1e-4 relative);
    # everything else matches the f32 reference math.
    assert jnp.allclose(out, ref, atol=2e-3, rtol=2e-3), "mismatch vs reference"

    print("KERNEL_OK")
</pallas_src>

<mosaic_0001>
module attributes {stable_mosaic.version = 11 : i64} {
  func.func @gcn_kernel(%arg0: i32, %arg1: memref<16x32xf32, #tpu.memory_space<vmem>>, %arg2: memref<1x16x16xf32, #tpu.memory_space<vmem>>, %arg3: memref<32x32xf32, #tpu.memory_space<vmem>>, %arg4: memref<1x32xf32, #tpu.memory_space<vmem>>, %arg5: memref<1x16x32xf32, #tpu.memory_space<vmem>>) attributes {dimension_semantics = [#tpu.dimension_semantics<parallel>], iteration_bounds = array<i64: 2>, scalar_prefetch = 0 : i64, scratch_operands = 0 : i64, tpu.core_type = #tpu.core_type<tc>, window_params = [{transform_indices = @transform_0, window_bounds = array<i64: 16, 32>}, {transform_indices = @transform_1, window_bounds = array<i64: 1, 16, 16>}, {pipeline_mode = #tpu.pipeline_mode<synchronous>, transform_indices = @transform_2, window_bounds = array<i64: 32, 32>}, {pipeline_mode = #tpu.pipeline_mode<synchronous>, transform_indices = @transform_3, window_bounds = array<i64: 1, 32>}, {transform_indices = @transform_4, window_bounds = array<i64: 1, 16, 32>}]} {
    %c0 = arith.constant 0 : index
    %c0_0 = arith.constant 0 : index
    %0 = vector.load %arg1[%c0, %c0_0] : memref<16x32xf32, #tpu.memory_space<vmem>>, vector<16x32xf32>
    %c0_1 = arith.constant 0 : index
    %c0_2 = arith.constant 0 : index
    %1 = vector.load %arg3[%c0_1, %c0_2] : memref<32x32xf32, #tpu.memory_space<vmem>>, vector<32x32xf32>
    %cst = arith.constant dense<0.000000e+00> : vector<16x32xf32>
    %2 = tpu.matmul %0, %1, %cst {dimension_numbers = #tpu.dot_dimension_numbers<[1], [0], [0], [1], [0, 0, 1, 1], [], []>} : vector<16x32xf32>, vector<32x32xf32>, vector<16x32xf32> -> vector<16x32xf32>
    %3 = vector.shape_cast %2 : vector<16x32xf32> to vector<1x16x32xf32>
    %c0_3 = arith.constant 0 : index
    %c0_4 = arith.constant 0 : index
    %c0_5 = arith.constant 0 : index
    %4 = vector.load %arg2[%c0_3, %c0_4, %c0_5] : memref<1x16x16xf32, #tpu.memory_space<vmem>>, vector<1x16x16xf32>
    %cst_6 = arith.constant dense<0.000000e+00> : vector<1x16xf32>
    %5 = vector.multi_reduction <add>, %4, %cst_6 [2] : vector<1x16x16xf32> to vector<1x16xf32>
    %6 = vector.shape_cast %5 : vector<1x16xf32> to vector<1x16x1xf32>
    %cst_7 = arith.constant 1.000000e+00 : f32
    %7 = vector.broadcast %cst_7 : f32 to vector<1x16x1xf32>
    %8 = arith.addf %6, %7 : vector<1x16x1xf32>
    %9 = tpu.reciprocal %8 {approx = true} : vector<1x16x1xf32> -> vector<1x16x1xf32>
    %10 = vector.broadcast %9 : vector<1x16x1xf32> to vector<1x16x16xf32>
    %11 = arith.mulf %4, %10 : vector<1x16x16xf32>
    "tpu.trace_start"() <{level = 10 : i32, message = "bij,bjf->bif"}> : () -> ()
    %cst_8 = arith.constant dense<0.000000e+00> : vector<1x16x32xf32>
    %12 = tpu.matmul %11, %3, %cst_8 {dimension_numbers = #tpu.dot_dimension_numbers<[2], [1], [1], [2], [0, 0, 0, 1, 1, 2], [0], [0]>} : vector<1x16x16xf32>, vector<1x16x32xf32>, vector<1x16x32xf32> -> vector<1x16x32xf32>
    "tpu.trace_stop"() : () -> ()
    %c0_9 = arith.constant 0 : index
    %c0_10 = arith.constant 0 : index
    %13 = vector.load %arg4[%c0_9, %c0_10] : memref<1x32xf32, #tpu.memory_space<vmem>>, vector<1x32xf32>
    %14 = vector.shape_cast %13 : vector<1x32xf32> to vector<1x1x32xf32>
    %15 = vector.broadcast %14 : vector<1x1x32xf32> to vector<1x16x32xf32>
    %16 = arith.addf %12, %15 : vector<1x16x32xf32>
    %c0_11 = arith.constant 0 : index
    %c0_12 = arith.constant 0 : index
    %c0_13 = arith.constant 0 : index
    %17 = vector.load %arg5[%c0_11, %c0_12, %c0_13] : memref<1x16x32xf32, #tpu.memory_space<vmem>>, vector<1x16x32xf32>
    tpu.vector_store %arg5[%c0_11, %c0_12, %c0_13], %16 {strides = array<i32>} : memref<1x16x32xf32, #tpu.memory_space<vmem>>, vector<1x16x32xf32>,
    return
  }
  func.func @transform_0(%arg0: i32) -> (i32, i32) {
    %c0_i32 = arith.constant 0 : i32
    %c0_i32_0 = arith.constant 0 : i32
    return %arg0, %c0_i32 : i32, i32
  }
  func.func @transform_1(%arg0: i32) -> (i32, i32, i32) {
    %c0_i32 = arith.constant 0 : i32
    %c0_i32_0 = arith.constant 0 : i32
    %c0_i32_1 = arith.constant 0 : i32
    return %arg0, %c0_i32, %c0_i32_0 : i32, i32, i32
  }
  func.func @transform_2(%arg0: i32) -> (i32, i32) {
    %c0_i32 = arith.constant 0 : i32
    %c0_i32_0 = arith.constant 0 : i32
    %c0_i32_1 = arith.constant 0 : i32
    return %c0_i32, %c0_i32_0 : i32, i32
  }
  func.func @transform_3(%arg0: i32) -> (i32, i32) {
    %c0_i32 = arith.constant 0 : i32
    %c0_i32_0 = arith.constant 0 : i32
    %c0_i32_1 = arith.constant 0 : i32
    return %c0_i32, %c0_i32_0 : i32, i32
  }
  func.func @transform_4(%arg0: i32) -> (i32, i32, i32) {
    %c0_i32 = arith.constant 0 : i32
    %c0_i32_0 = arith.constant 0 : i32
    %c0_i32_1 = arith.constant 0 : i32
    return %arg0, %c0_i32, %c0_i32_0 : i32, i32, i32
  }
}

</mosaic_0001>

<llo_original>
// kernel: tpu_custom_call.1
$region0: #{tpu_custom_call.1}
  #allocation0 [shape = 'u32[]', space=smem, size = 0x4, offset = 0x4, fixed_abs, tag = 'smem constant byte address 0x4 - core index']
  #allocation1 [shape = 'u32[72,128]{1,0:T(1,128)}', space=vmem, size = 0x9000, scoped, tag = 'internal scratch']
  %s0 = inlined_call_operand.hbm [shape: f32[32,32], index: 0, kind: input, shape index: {}]
  %s1 = inlined_call_operand.hbm [shape: f32[2,16,16], index: 1, kind: input, shape index: {}]
  %s2 = inlined_call_operand.hbm [shape: f32[32,32], index: 2, kind: input, shape index: {}]
  %s3 = inlined_call_operand.vmem [shape: f32[1,32], index: 3, kind: input, shape index: {}]
  %s4 = inlined_call_operand.hbm [shape: f32[2,16,32], index: 4, kind: output, shape index: {}]
  %s5 = sld [smem:[#allocation0]]
  $region61: #{tpu_custom_call.1} parent=0
    _
  %s7 = ssub.s32 1, %s5
  %s8 = scalar_select 0, %s7, %s5
  $region1: #{tpu_custom_call.1} parent=0
    #allocation2 [shape = 'u8[16384]{0}', space=vmem, size = 0x4000, scoped, tag = 'input window, operand 0']
    #allocation3 [shape = 's32[2]{0}', space=sflag, size = 0x8, scoped, tag = 'scoped memory for tpu_custom_call.1']
    #allocation4 [shape = 's32[2]{0}', space=sflag, size = 0x8, scoped, tag = 'scoped memory for tpu_custom_call.1']
    #allocation5 [shape = 'u8[16384]{0}', space=vmem, size = 0x4000, scoped, tag = 'input window, operand 1']
    #allocation6 [shape = 's32[2]{0}', space=sflag, size = 0x8, scoped, tag = 'scoped memory for tpu_custom_call.1']
    #allocation7 [shape = 'u8[16384]{0}', space=vmem, size = 0x4000, scoped, tag = 'input window, operand 2, single buffered']
    #allocation8 [shape = 'u8[16384]{0}', space=vmem, size = 0x4000, scoped, tag = 'output window, operand 0']
    %9 = vsyncpa [#allocation3], 0
    %s10 = scalar_lea.sflag [#allocation3], 1
    %11 = vsyncpa %s10, 0
    %12 = vsyncpa [#allocation6], 0
    %s13 = scalar_lea.sflag [#allocation6], 1
    %14 = vsyncpa %s13, 0
    %15 = vsyncpa [#allocation4], 0
    %s16 = scalar_lea.sflag [#allocation4], 1
    %17 = vsyncpa %s16, 0
    loop: start=0, step=1, limit=4
    $region2: #{tpu_custom_call.1} parent=1 // loop_pre_header
      _
    $region3: #{tpu_custom_call.1} parent=1 // loop_header
      %s19 = sphi 0, %s23
      %p20 = scmp.ge.s32.totalorder %s19, 4
      %s29 = sphi 0, %s31
      %s32 = sphi 0, %s29
      %s33 = sphi 0, %s32
      %s49 = sphi 0, %s33
      %s55 = sphi 0, %s57
      %s58 = sphi 0, %s55
      %s59 = sphi 0, %s58
      %s75 = sphi 0, %s59
      %s79 = sphi 0, %s79
      %s81 = sphi 0, %s79
      %s82 = sphi 0, %s81
      %s96 = sphi 0, %s82
      %s100 = sphi 0, %s100
      %s102 = sphi 0, %s100
      %s103 = sphi 0, %s102
      %s117 = sphi 0, %s103
      %s123 = sphi 0, %s125
      %s126 = sphi 0, %s123
      %s127 = sphi 0, %s126
      %s143 = sphi 0, %s127
    $region4: #{tpu_custom_call.1} parent=1 // loop_header_branch
      %22 = sbr.rel (%p20) target = $region8
    $region5: #{tpu_custom_call.1} parent=1 // loop_body
      %s24 = ssub.s32 %s19, 1
      %s25 = ssub.s32 %s19, 2
      %s26 = sadd.s32 %s19, 1
      %s27 = ssub.s32 %s19, %s26
      %p28 = scmp.eq.s32.totalorder %s27, 0
      %s30 = sadd.s32 %s29, 1
      %s31 = scalar_select %p28, %s29, %s30
      %p34 = pneg %p28
      %p35 = scmp.eq.s32.totalorder %s19, 1
      %p36 = por %p34, %p35
      %p37 = scmp.ne.s32.totalorder %s29, %s32
      %p38 = scmp.eq.s32.totalorder %s19, 0
      %p39 = por %p37, %p38
      %p40 = scmp.ne.s32.totalorder %s29, %s32
      %p41 = scmp.eq.s32.totalorder %s24, 1
      %p42 = por %p40, %p41
      %p43 = scmp.ne.s32.totalorder %s32, %s33
      %p44 = scmp.eq.s32.totalorder %s24, 0
      %p45 = por %p43, %p44
      %p46 = scmp.ne.s32.totalorder %s32, %s33
      %p47 = scmp.eq.s32.totalorder %s25, 1
      %p48 = por %p46, %p47
      %p50 = scmp.ne.s32.totalorder %s33, %s49
      %p51 = scmp.eq.s32.totalorder %s25, 0
      %p52 = por %p50, %p51
      %s53 = ssub.s32 %s19, %s26
      %p54 = scmp.eq.s32.totalorder %s53, 0
      %s56 = sadd.s32 %s55, 1
      %s57 = scalar_select %p54, %s55, %s56
      %p60 = pneg %p54
      %p61 = scmp.eq.s32.totalorder %s19, 1
      %p62 = por %p60, %p61
      %p63 = scmp.ne.s32.totalorder %s55, %s58
      %p64 = scmp.eq.s32.totalorder %s19, 0
      %p65 = por %p63, %p64
      %p66 = scmp.ne.s32.totalorder %s55, %s58
      %p67 = scmp.eq.s32.totalorder %s24, 1
      %p68 = por %p66, %p67
      %p69 = scmp.ne.s32.totalorder %s58, %s59
      %p70 = scmp.eq.s32.totalorder %s24, 0
      %p71 = por %p69, %p70
      %p72 = scmp.ne.s32.totalorder %s58, %s59
      %p73 = scmp.eq.s32.totalorder %s25, 1
      %p74 = por %p72, %p73
      %p76 = scmp.ne.s32.totalorder %s59, %s75
      %p77 = scmp.eq.s32.totalorder %s25, 0
      %p78 = por %p76, %p77
      %s80 = sadd.s32 %s79, 1
      %p83 = scmp.eq.s32.totalorder %s19, 1
      %p84 = scmp.ne.s32.totalorder %s79, %s81
      %p85 = scmp.eq.s32.totalorder %s19, 0
      %p86 = por %p84, %p85
      %p87 = scmp.ne.s32.totalorder %s79, %s81
      %p88 = scmp.eq.s32.totalorder %s24, 1
      %p89 = por %p87, %p88
      %p90 = scmp.ne.s32.totalorder %s81, %s82
      %p91 = scmp.eq.s32.totalorder %s24, 0
      %p92 = por %p90, %p91
      %p93 = scmp.ne.s32.totalorder %s81, %s82
      %p94 = scmp.eq.s32.totalorder %s25, 1
      %p95 = por %p93, %p94
      %p97 = scmp.ne.s32.totalorder %s82, %s96
      %p98 = scmp.eq.s32.totalorder %s25, 0
      %p99 = por %p97, %p98
      %s101 = sadd.s32 %s100, 1
      %p104 = scmp.eq.s32.totalorder %s19, 1
      %p105 = scmp.ne.s32.totalorder %s100, %s102
      %p106 = scmp.eq.s32.totalorder %s19, 0
      %p107 = por %p105, %p106
      %p108 = scmp.ne.s32.totalorder %s100, %s102
      %p109 = scmp.eq.s32.totalorder %s24, 1
      %p110 = por %p108, %p109
      %p111 = scmp.ne.s32.totalorder %s102, %s103
      %p112 = scmp.eq.s32.totalorder %s24, 0
      %p113 = por %p111, %p112
      %p114 = scmp.ne.s32.totalorder %s102, %s103
      %p115 = scmp.eq.s32.totalorder %s25, 1
      %p116 = por %p114, %p115
      %p118 = scmp.ne.s32.totalorder %s103, %s117
      %p119 = scmp.eq.s32.totalorder %s25, 0
      %p120 = por %p118, %p119
      %s121 = ssub.s32 %s19, %s26
      %p122 = scmp.eq.s32.totalorder %s121, 0
      %s124 = sadd.s32 %s123, 1
      %s125 = scalar_select %p122, %s123, %s124
      %p128 = pneg %p122
      %p129 = scmp.eq.s32.totalorder %s19, 1
      %p130 = por %p128, %p129
      %p131 = scmp.ne.s32.totalorder %s123, %s126
      %p132 = scmp.eq.s32.totalorder %s19, 0
      %p133 = por %p131, %p132
      %p134 = scmp.ne.s32.totalorder %s123, %s126
      %p135 = scmp.eq.s32.totalorder %s24, 1
      %p136 = por %p134, %p135
      %p137 = scmp.ne.s32.totalorder %s126, %s127
      %p138 = scmp.eq.s32.totalorder %s24, 0
      %p139 = por %p137, %p138
      %p140 = scmp.ne.s32.totalorder %s126, %s127
      %p141 = scmp.eq.s32.totalorder %s25, 1
      %p142 = por %p140, %p141
      %p144 = scmp.ne.s32.totalorder %s127, %s143
      %p145 = scmp.eq.s32.totalorder %s25, 0
      %p146 = por %p144, %p145
      %p147 = scmp.le.s32.totalorder 1, %s19
      %p148 = scmp.lt.s32.totalorder %s19, 3
      %p149 = pnand %p147, %p148
      %p150 = pneg %p149
      // Predicated region
      $region9: #{tpu_custom_call.1} parent=5 // pred_check
        _
      $region10: #{tpu_custom_call.1} parent=5 // pred_check_branch
        %152 = sbr.rel (%p149) target = $region12
      $region11: #{tpu_custom_call.1} parent=5 // pred_region
        %s153 = ssub.s32 %s19, 1
        // Predicated region
        $region13: #{tpu_custom_call.1} parent=11 // pred_check
          %p154 = pneg %p92
        $region14: #{tpu_custom_call.1} parent=11 // pred_check_branch
          %156 = sbr.rel (%p154) target = $region16
        $region15: #{tpu_custom_call.1} parent=11 // pred_region
          %158 = vsyncadd [#allocation6], 0
          %s159 = sshll.u32 %s2, 4
          %s160 = int_to_ptr.hbm [resolvable:$true] %s159
          %s161 = sshll.u32 [#allocation7], 4
          %s162 = int_to_ptr.vmem [resolvable:$true] %s161
          %167 = dma.hbm_to_vmem [thread:$0]  %s160, 512, %s162, [#allocation6], 128, 128, 8
        $region16: #{tpu_custom_call.1} parent=11 // pred_fallthru
          _
        // Predicated region
        $region17: #{tpu_custom_call.1} parent=11 // pred_check
          %p168 = pneg %p113
        $region18: #{tpu_custom_call.1} parent=11 // pred_check_branch
          %170 = sbr.rel (%p168) target = $region20
        $region19: #{tpu_custom_call.1} parent=11 // pred_region
          _
        $region20: #{tpu_custom_call.1} parent=11 // pred_fallthru
          _
      $region12: #{tpu_custom_call.1} parent=5 // pred_fallthru
        _
      %p171 = scmp.lt.s32.totalorder %s19, 2
      // Predicated region
      $region21: #{tpu_custom_call.1} parent=5 // pred_check
        %p172 = pneg %p171
      $region22: #{tpu_custom_call.1} parent=5 // pred_check_branch
        %174 = sbr.rel (%p172) target = $region24
      $region23: #{tpu_custom_call.1} parent=5 // pred_region
        // Predicated region
        $region25: #{tpu_custom_call.1} parent=23 // pred_check
          %p175 = pneg %p39
        $region26: #{tpu_custom_call.1} parent=23 // pred_check_branch
          %177 = sbr.rel (%p175) target = $region28
        $region27: #{tpu_custom_call.1} parent=23 // pred_region
          %s178 = sand.u32 %s29, 1
          %s179 = scalar_lea.sflag [#allocation3], %s178
          %s180 = sand.u32 %s29, 1
          %s181 = smul.addr %s180, 16
          %s182 = scalar_lea.vmem [#allocation2], %s181
          %s183 = smul.u32 2, %s19
          %185 = vsyncadd %s179, 0
          %s186 = smul.addr %s183, 8
          %s187 = scalar_lea.hbm %s0, %s186
          %s188 = sshll.u32 %s187, 4
          %s189 = int_to_ptr.hbm [resolvable:$true] %s188
          %s190 = sshll.u32 %s182, 4
          %s191 = int_to_ptr.vmem [resolvable:$true] %s190
          %196 = dma.hbm_to_vmem [thread:$0]  %s189, 256, %s191, %s179, 128, 128, 8
        $region28: #{tpu_custom_call.1} parent=23 // pred_fallthru
          _
        // Predicated region
        $region29: #{tpu_custom_call.1} parent=23 // pred_check
          %p197 = pneg %p65
        $region30: #{tpu_custom_call.1} parent=23 // pred_check_branch
          %199 = sbr.rel (%p197) target = $region32
        $region31: #{tpu_custom_call.1} parent=23 // pred_region
          %s200 = sand.u32 %s19, 1
          %s201 = scalar_lea.sflag [#allocation6], %s200
          %s202 = sand.u32 %s55, 1
          %s203 = smul.addr %s202, 16
          %s204 = scalar_lea.vmem [#allocation5], %s203
          %206 = vsyncadd %s201, 0
          %s207 = smul.addr %s19, 2
          %s208 = smul.addr %s207, 8
          %s209 = scalar_lea.hbm %s1, %s208
          %s210 = sshll.u32 %s209, 4
          %s211 = int_to_ptr.hbm [resolvable:$true] %s210
          %s212 = sshll.u32 %s204, 4
          %s213 = int_to_ptr.vmem [resolvable:$true] %s212
          %218 = dma.hbm_to_vmem [thread:$0]  %s211, 256, %s213, %s201, 128, 128, 8
        $region32: #{tpu_custom_call.1} parent=23 // pred_fallthru
          _
      $region24: #{tpu_custom_call.1} parent=5 // pred_fallthru
        _
      %p219 = scmp.le.s32.totalorder 1, %s19
      %p220 = scmp.lt.s32.totalorder %s19, 3
      %p221 = pnand %p219, %p220
      %p222 = pneg %p221
      // Predicated region
      $region33: #{tpu_custom_call.1} parent=5 // pred_check
        _
      $region34: #{tpu_custom_call.1} parent=5 // pred_check_branch
        %224 = sbr.rel (%p221) target = $region36
      $region35: #{tpu_custom_call.1} parent=5 // pred_region
        %s225 = ssub.s32 %s19, 1
        %s226 = sand.u32 %s32, 1
        %s227 = scalar_lea.sflag [#allocation3], %s226
        %s228 = sand.u32 %s32, 1
        %s229 = smul.addr %s228, 16
        %s230 = scalar_lea.vmem [#allocation2], %s229
        // Predicated region
        $region37: #{tpu_custom_call.1} parent=35 // pred_check
          %p231 = pneg %p45
        $region38: #{tpu_custom_call.1} parent=35 // pred_check_branch
          %233 = sbr.rel (%p231) target = $region40
        $region39: #{tpu_custom_call.1} parent=35 // pred_region
          %235 = dma.done %s227, 256
        $region40: #{tpu_custom_call.1} parent=35 // pred_fallthru
          _
        %s236 = sand.u32 %s24, 1
        %s237 = scalar_lea.sflag [#allocation6], %s236
        %s238 = sand.u32 %s58, 1
        %s239 = smul.addr %s238, 16
        %s240 = scalar_lea.vmem [#allocation5], %s239
        // Predicated region
        $region41: #{tpu_custom_call.1} parent=35 // pred_check
          %p241 = pneg %p71
        $region42: #{tpu_custom_call.1} parent=35 // pred_check_branch
          %243 = sbr.rel (%p241) target = $region44
        $region43: #{tpu_custom_call.1} parent=35 // pred_region
          %245 = dma.done %s237, 256
        $region44: #{tpu_custom_call.1} parent=35 // pred_fallthru
          _
        // Predicated region
        $region45: #{tpu_custom_call.1} parent=35 // pred_check
          %p246 = pneg %p92
        $region46: #{tpu_custom_call.1} parent=35 // pred_check_branch
          %248 = sbr.rel (%p246) target = $region48
        $region47: #{tpu_custom_call.1} parent=35 // pred_region
          %250 = dma.done [#allocation6], 512
        $region48: #{tpu_custom_call.1} parent=35 // pred_fallthru
          _
        %s251 = sand.u32 %s32, 1
        %s252 = scalar_lea.sflag [#allocation3], %s251
        %s253 = sand.u32 %s32, 1
        %s254 = smul.addr %s253, 16
        %s255 = scalar_lea.vmem [#allocation2], %s254
        %p256 = pneg %p45
        %p257 = pneg %p42
        %s258 = sand.u32 %s24, 1
        %s259 = scalar_lea.sflag [#allocation6], %s258
        %s260 = sand.u32 %s58, 1
        %s261 = smul.addr %s260, 16
        %s262 = scalar_lea.vmem [#allocation5], %s261
        %p263 = pneg %p71
        %p264 = pneg %p68
        %p265 = pneg %p92
        %p266 = pneg %p89
        %p267 = pneg %p113
        %p268 = pneg %p110
        %p269 = pneg %p139
        %p270 = pneg %p136
        %s271 = sand.u32 %s126, 1
        %s272 = scalar_lea.sflag [#allocation4], %s271
        %s273 = sand.u32 %s126, 1
        %s274 = smul.addr %s273, 16
        %s275 = scalar_lea.vmem [#allocation8], %s274
        %s276 = smul.u32 2, %s24
        %v277 = vld [vmem:[%s230] sm:$0xff]
        %v278 = vld [vmem:[%s230 + $0x8] sm:$0xff]
        %v279 = vld [vmem:[#allocation7] sm:$0xff]
        %v280 = vld [vmem:[#allocation7 + $0x8] sm:$0xff]
        %v281 = vld [vmem:[#allocation7 + $0x10] sm:$0xff]
        %v282 = vld [vmem:[#allocation7 + $0x18] sm:$0xff]
        %vm283 = vcmask 261120
        %v285 = vsel %vm283, %v277, 0
        %v288 = vsel %vm283, %v278, 0
        %290 = vmatpush.msra.mxu0 0.0
        %291 = vmatpush.msra.mxu0 0.0
        %292 = vmatpush.msra.mxu0 0.0
        %293 = vmatpush.msra.mxu0 0.0
        %294 = vmatpush.msra.mxu0 0.0
        %295 = vmatpush.msra.mxu0 0.0
        %296 = vmatpush.msra.mxu0 0.0
        %297 = vmatpush.msra.mxu0 0.0
        %298 = vmatpush.msra.mxu0 0.0
        %299 = vmatpush.msra.mxu0 0.0
        %300 = vmatpush.msra.mxu0 0.0
        %301 = vmatpush.msra.mxu0 0.0
        %302 = vmatpush.msra.mxu0 %v282
        %303 = vmatpush.msra.mxu0 %v281
        %304 = vmatpush.msra.mxu0 %v280
        %305 = vmatpush.msra.mxu0 %v279
        %306 = vmatmul.f32.gmra.mxu0 %v285
        %v307 = vpop.f32.mrf.mxu0
        %v308 = vadd.f32 0.0, %v307
        %309 = vmatmul.f32.gmra.mxu0 %v288
        %v310 = vpop.f32.mrf.mxu0
        %v311 = vadd.f32 0.0, %v310
        %312 = vdwg.mxu0
        %v313 = vld [vmem:[%s240] sm:$0xff]
        %v314 = vld [vmem:[%s240 + $0x8] sm:$0xff]
        %vm315 = vcmask 130048
        %v316 = vsel %vm315, %v313, 0.0
        %317 = vadd.xlane.f32.xlu0 %v316
        %v318 = vpop.xlane.xlu0 %317
        %v319 = vsel %vm315, %v314, 0.0
        %320 = vadd.xlane.f32.xlu0 %v319
        %v321 = vpop.xlane.xlu0 %320
        %v322 = vadd.f32 %v318, 1.0
        %v323 = vadd.f32 %v321, 1.0
        %v324 = vrcp.pop %v322
        %v325 = vrcp.pop %v323
        %v326 = vmul.f32 %v313, %v324
        %v327 = vmul.f32 %v314, %v325
        %v328 = vld [vmem:[%s3] sm:$0x1]
        %v330 = vperm.slane %v328, 0
        %v333 = vsel %vm315, %v326, 0
        %v336 = vsel %vm315, %v327, 0
        %338 = vmatpush.msra.mxu0 0.0
        %339 = vmatpush.msra.mxu0 0.0
        %340 = vmatpush.msra.mxu0 0.0
        %341 = vmatpush.msra.mxu0 0.0
        %342 = vmatpush.msra.mxu0 0.0
        %343 = vmatpush.msra.mxu0 0.0
        %344 = vmatpush.msra.mxu0 0.0
        %345 = vmatpush.msra.mxu0 0.0
        %346 = vmatpush.msra.mxu0 0.0
        %347 = vmatpush.msra.mxu0 0.0
        %348 = vmatpush.msra.mxu0 0.0
        %349 = vmatpush.msra.mxu0 0.0
        %350 = vmatpush.msra.mxu0 0.0
        %351 = vmatpush.msra.mxu0 0.0
        %352 = vmatpush.msra.mxu0 %v311
        %353 = vmatpush.msra.mxu0 %v308
        %354 = vmatmul.f32.gmra.mxu0 %v333
        %v355 = vpop.f32.mrf.mxu0
        %v356 = vadd.f32 %v330, %v355
        %357 = vmatmul.f32.gmra.mxu0 %v336
        %v358 = vpop.f32.mrf.mxu0
        %v359 = vadd.f32 %v330, %v358
        %360 = vdwg.mxu0
        %361 = vst.msk [vmem:[%s275] sm:$0xff] %vm283, %v356
        %362 = vst.msk [vmem:[%s275 + $0x8] sm:$0xff] %vm283, %v359
        %s363 = sand.u32 %s126, 1
        %s364 = scalar_lea.sflag [#allocation4], %s363
        %s365 = sand.u32 %s126, 1
        %s366 = smul.addr %s365, 16
        %s367 = scalar_lea.vmem [#allocation8], %s366
        // Predicated region
        $region49: #{tpu_custom_call.1} parent=35 // pred_check
          %p368 = pneg %p136
        $region50: #{tpu_custom_call.1} parent=35 // pred_check_branch
          %370 = sbr.rel (%p368) target = $region52
        $region51: #{tpu_custom_call.1} parent=35 // pred_region
          %372 = vsyncadd %s364, 0
          %s373 = smul.addr %s24, 2
          %s374 = smul.addr %s373, 8
          %s375 = scalar_lea.hbm %s4, %s374
          %s376 = sshll.u32 %s367, 4
          %s377 = int_to_ptr.vmem [resolvable:$true] %s376
          %s378 = sshll.u32 %s375, 4
          %s379 = int_to_ptr.hbm [resolvable:$true] %s378
          %384 = dma.vmem_to_hbm [thread:$0]  %s377, 256, %s379, %s364, 128, 128, 8
        $region52: #{tpu_custom_call.1} parent=35 // pred_fallthru
          _
      $region36: #{tpu_custom_call.1} parent=5 // pred_fallthru
        _
      %p385 = scmp.le.s32.totalorder 2, %s19
      // Predicated region
      $region53: #{tpu_custom_call.1} parent=5 // pred_check
        %p386 = pneg %p385
      $region54: #{tpu_custom_call.1} parent=5 // pred_check_branch
        %388 = sbr.rel (%p386) target = $region56
      $region55: #{tpu_custom_call.1} parent=5 // pred_region
        %s389 = ssub.s32 %s19, 2
        // Predicated region
        $region57: #{tpu_custom_call.1} parent=55 // pred_check
          %p390 = pneg %p142
        $region58: #{tpu_custom_call.1} parent=55 // pred_check_branch
          %392 = sbr.rel (%p390) target = $region60
        $region59: #{tpu_custom_call.1} parent=55 // pred_region
          %s393 = sand.u32 %s127, 1
          %s394 = scalar_lea.sflag [#allocation4], %s393
          %s395 = sand.u32 %s127, 1
          %s396 = smul.addr %s395, 16
          %s397 = scalar_lea.vmem [#allocation8], %s396
          %399 = dma.done %s394, 256
        $region60: #{tpu_custom_call.1} parent=55 // pred_fallthru
          _
      $region56: #{tpu_custom_call.1} parent=5 // pred_fallthru
        _
    $region6: #{tpu_custom_call.1} parent=1 // loop_footer
      %s23 = sadd.s32 1, %s19
    $region7: #{tpu_custom_call.1} parent=1 // loop_footer_branch
      %18 = sbr.rel target = $region3
    $region8: #{tpu_custom_call.1} parent=1 // loop_exit
      _
    %400 = vsyncpa [#allocation3], 1
    %s401 = scalar_lea.sflag [#allocation3], 1
    %402 = vsyncpa %s401, 1
    %403 = vsyncpa [#allocation6], 1
    %s404 = scalar_lea.sflag [#allocation6], 1
    %405 = vsyncpa %s404, 1
    %406 = vsyncpa [#allocation4], 1
    %s407 = scalar_lea.sflag [#allocation4], 1
    %408 = vsyncpa %s407, 1

</llo_original>
